<compile_context>
chip_gen: v5e
topology: v5e:2x2
jax: 0.10.0
libtpu: 0.0.40
codegen_flags: <defaults>
</compile_context>

<pallas_src>
import jax
import jax.numpy as jnp
from jax import lax
from jax.experimental import pallas as pl
from jax.experimental.pallas import tpu as pltpu

KS = 3                       # kernel_size of every Conv1d
DILATIONS = (1, 2, 4)        # TCNBlock default


def _round_up(x, m):
    return (x + m - 1) // m * m


def _make_kernel(dilations, L0, TB, CP):
    """Kernel over a (TB, CP, L) channels-on-sublane / length-on-lane tile."""

    def kernel(x_ref, w_ref, b_ref, o_ref):
        # x_ref : (TB, CP, L0)              zero-padded NCL input block
        # w_ref : (n_layers*KS*CP, CP)      packed conv weights (tap-major rows)
        # b_ref : (n_layers, CP, 1)         packed conv biases (channel on sublane)
        # o_ref : (TB, CP, L_fin)           post-ReLU output of the last conv
        x = x_ref[...]                                       # (TB, CP, L0)
        L = L0
        for l, d in enumerate(dilations):
            pad = (KS - 1) * d                               # PyTorch padding=(k-1)*d
            L_out = L + pad                                  # = L + 2*pad - d*(KS-1)

            w = w_ref[l * KS * CP:(l + 1) * KS * CP, :]      # (KS*CP, CP)
            w_b = jnp.broadcast_to(w[None, :, :], (TB, KS * CP, CP))
            # Batched MXU matmul: (TB, KS*CP, CP) x (TB, CP, L) -> (TB, KS*CP, L)
            y = lax.dot_general(w_b, x,
                                dimension_numbers=(((2,), (1,)), ((0,), (0,))),
                                preferred_element_type=jnp.float32)

            bias = b_ref[l]                                  # (CP, 1)
            res = jnp.broadcast_to(bias[None, :, :], (TB, CP, L_out))

            # Tap k lands at output columns [off, off+L); accumulate in vregs.
            for k in range(KS):
                off = (KS - 1 - k) * d
                yk = y[:, k * CP:(k + 1) * CP, :]            # (TB, CP, L), 8-aligned
                parts = []
                if off > 0:
                    parts.append(jnp.zeros((TB, CP, off), jnp.float32))
                parts.append(yk)
                if pad - off > 0:
                    parts.append(jnp.zeros((TB, CP, pad - off), jnp.float32))
                shifted = jnp.concatenate(parts, axis=-1) if len(parts) > 1 else yk
                res = res + shifted

            x = jnp.maximum(res, 0.0)                        # ReLU, stays in vregs
            L = L_out

        o_ref[...] = x.astype(o_ref.dtype)                   # single store

    return kernel


def pack_params(params, CP):
    """Pack per-layer (Cout, Cin, KS) weights into one (n*KS*CP, CP) buffer
    (rows: layer-major, then tap-major, then out-channel) and biases into
    (n, CP, 1).  Padded rows/cols are zero, which keeps the padded channel
    rows of every activation identically zero through bias + ReLU."""
    wrows, brows = [], []
    for (w, b) in params:
        cout, cin, _ = w.shape
        wt = jnp.transpose(w, (2, 0, 1))                     # (KS, cout, cin)
        wt = jnp.pad(wt, ((0, 0), (0, CP - cout), (0, CP - cin)))
        wrows.append(wt.reshape(KS * CP, CP))
        brows.append(jnp.pad(b, (0, CP - cout)).reshape(CP, 1))
    wbuf = jnp.concatenate(wrows, axis=0).astype(jnp.float32)
    bbuf = jnp.stack(brows, axis=0).astype(jnp.float32)
    return wbuf, bbuf


def tcn_block_forward(x_ncl, params):
    """x_ncl: (B, C_in, L) float32 NCL.  Returns (B, C_out, L + sum((KS-1)*d))."""
    B, cin0, L0 = x_ncl.shape
    cout = params[0][0].shape[0]
    assert len(params) == len(DILATIONS)
    L_fin = L0 + sum((KS - 1) * d for d in DILATIONS)
    CP = _round_up(max(cin0, cout), 8)                       # sublane-aligned channels

    # TB <= 8 keeps live values inside the 64-vreg file; B//2 guarantees
    # nb >= 2 grid steps whenever B >= 2 (v7x dual-core sharding + pipelining).
    TB = max(1, min(8, B // 2))
    nb = pl.cdiv(B, TB)
    B_pad = nb * TB

    x = x_ncl.astype(jnp.float32)
    x = jnp.pad(x, ((0, B_pad - B), (0, CP - cin0), (0, 0)))  # still NCL, no transpose

    wbuf, bbuf = pack_params(params, CP)
    kernel = _make_kernel(DILATIONS, L0, TB, CP)

    # Explicit VMEM budget: double-buffered in/out tiles + packed params.
    itemsize = 4
    tile_bytes = 2 * (TB * CP * L0 + TB * CP * L_fin) * itemsize
    param_bytes = (wbuf.size + bbuf.size) * itemsize
    vmem_limit = int(min(32 * 2**20, max(4 * 2**20, 6 * (tile_bytes + param_bytes))))

    out = pl.pallas_call(
        kernel,
        out_shape=jax.ShapeDtypeStruct((B_pad, CP, L_fin), jnp.float32),
        grid=(nb,),
        in_specs=[pl.BlockSpec((TB, CP, L0), lambda g: (g, 0, 0)),
                  pl.BlockSpec(wbuf.shape, lambda g: (0, 0)),
                  pl.BlockSpec(bbuf.shape, lambda g: (0, 0, 0))],
        out_specs=pl.BlockSpec((TB, CP, L_fin), lambda g: (g, 0, 0)),
        compiler_params=pltpu.CompilerParams(
            dimension_semantics=("parallel",),          # nb >= 2 => really sharded
            vmem_limit_bytes=vmem_limit),
    )(x, wbuf, bbuf)

    return out[:B, :cout, :]                            # drop batch/channel padding


def init_params(key, in_channels, out_channels):
    """Deterministic init mimicking PyTorch Conv1d defaults
    (uniform(-1/sqrt(fan_in), 1/sqrt(fan_in)), fan_in = Cin*KS).
    Weights use the native PyTorch layout (Cout, Cin, KS)."""
    params = []
    cin = in_channels
    for _d in DILATIONS:
        key, k1, k2 = jax.random.split(key, 3)
        bound = 1.0 / jnp.sqrt(cin * KS)
        w = jax.random.uniform(k1, (out_channels, cin, KS), jnp.float32, -bound, bound)
        b = jax.random.uniform(k2, (out_channels,), jnp.float32, -bound, bound)
        params.append((w, b))
        cin = out_channels
    return params


def reference_forward(x_ncl, params):
    """Pure-JAX reference using lax.conv_general_dilated (NCL layout)."""
    x = x_ncl.astype(jnp.float32)
    for (w, bias), d in zip(params, DILATIONS):
        pad = (KS - 1) * d
        x = lax.conv_general_dilated(
            x, w, window_strides=(1,), padding=[(pad, pad)],
            rhs_dilation=(d,), dimension_numbers=("NCH", "OIH", "NCH"))
        x = jnp.maximum(x + bias.reshape(1, -1, 1), 0.0)
    return x


if __name__ == "__main__":
    key = jax.random.PRNGKey(0)
    key, kx = jax.random.split(key)
    B, C_IN, C_OUT, L = 2, 6, 10, 16
    x = jax.random.normal(kx, (B, C_IN, L), jnp.float32)     # NCL input
    params = init_params(key, C_IN, C_OUT)

    out = tcn_block_forward(x, params)
    out = jax.block_until_ready(out)

    ref = reference_forward(x, params)
    L_fin = L + sum((KS - 1) * d for d in DILATIONS)
    assert out.shape == (B, C_OUT, L_fin), out.shape
    assert jnp.allclose(out, ref, atol=1e-4, rtol=1e-4), (out, ref)
    print("KERNEL_OK")
</pallas_src>

<mosaic_0001>
module attributes {stable_mosaic.version = 11 : i64} {
  func.func @kernel(%arg0: i32, %arg1: memref<1x16x16xf32, #tpu.memory_space<vmem>>, %arg2: memref<144x16xf32, #tpu.memory_space<vmem>>, %arg3: memref<3x16x1xf32, #tpu.memory_space<vmem>>, %arg4: memref<1x16x30xf32, #tpu.memory_space<vmem>>) attributes {dimension_semantics = [#tpu.dimension_semantics<parallel>], iteration_bounds = array<i64: 2>, scalar_prefetch = 0 : i64, scratch_operands = 0 : i64, tpu.core_type = #tpu.core_type<tc>, window_params = [{transform_indices = @transform_0, window_bounds = array<i64: 1, 16, 16>}, {pipeline_mode = #tpu.pipeline_mode<synchronous>, transform_indices = @transform_1, window_bounds = array<i64: 144, 16>}, {pipeline_mode = #tpu.pipeline_mode<synchronous>, transform_indices = @transform_2, window_bounds = array<i64: 3, 16, 1>}, {transform_indices = @transform_3, window_bounds = array<i64: 1, 16, 30>}]} {
    %c0 = arith.constant 0 : index
    %c0_0 = arith.constant 0 : index
    %c0_1 = arith.constant 0 : index
    %0 = vector.load %arg1[%c0, %c0_0, %c0_1] : memref<1x16x16xf32, #tpu.memory_space<vmem>>, vector<1x16x16xf32>
    %c0_2 = arith.constant 0 : index
    %c0_3 = arith.constant 0 : index
    %1 = vector.load %arg2[%c0_2, %c0_3] : memref<144x16xf32, #tpu.memory_space<vmem>>, vector<48x16xf32>
    %2 = vector.shape_cast %1 : vector<48x16xf32> to vector<1x48x16xf32>
    %cst = arith.constant dense<0.000000e+00> : vector<1x48x16xf32>
    %3 = tpu.matmul %2, %0, %cst {dimension_numbers = #tpu.dot_dimension_numbers<[2], [1], [1], [2], [0, 0, 0, 1, 1, 2], [0], [0]>} : vector<1x48x16xf32>, vector<1x16x16xf32>, vector<1x48x16xf32> -> vector<1x48x16xf32>
    %c0_4 = arith.constant 0 : index
    %c0_5 = arith.constant 0 : index
    %c0_6 = arith.constant 0 : index
    %4 = vector.load %arg3[%c0_4, %c0_5, %c0_6] : memref<3x16x1xf32, #tpu.memory_space<vmem>>, vector<1x16x1xf32>
    %5 = vector.shape_cast %4 : vector<1x16x1xf32> to vector<16x1xf32>
    %6 = vector.shape_cast %5 : vector<16x1xf32> to vector<1x16x1xf32>
    %7 = vector.shape_cast %6 : vector<1x16x1xf32> to vector<1x16x1xf32>
    %8 = vector.broadcast %7 : vector<1x16x1xf32> to vector<1x16x18xf32>
    %9 = vector.extract_strided_slice %3 {offsets = [0, 0, 0], sizes = [1, 16, 16], strides = [1, 1, 1]} : vector<1x48x16xf32> to vector<1x16x16xf32>
    %cst_7 = arith.constant 0.000000e+00 : f32
    %10 = vector.broadcast %cst_7 : f32 to vector<1x16x2xf32>
    %11 = tpu.concatenate %10, %9 in 2 : vector<1x16x2xf32>, vector<1x16x16xf32> -> vector<1x16x18xf32>
    %12 = arith.addf %8, %11 : vector<1x16x18xf32>
    %13 = vector.extract_strided_slice %3 {offsets = [0, 16, 0], sizes = [1, 16, 16], strides = [1, 1, 1]} : vector<1x48x16xf32> to vector<1x16x16xf32>
    %cst_8 = arith.constant 0.000000e+00 : f32
    %14 = vector.broadcast %cst_8 : f32 to vector<1x16x1xf32>
    %cst_9 = arith.constant 0.000000e+00 : f32
    %15 = vector.broadcast %cst_9 : f32 to vector<1x16x1xf32>
    %16 = tpu.concatenate %14, %13, %15 in 2 : vector<1x16x1xf32>, vector<1x16x16xf32>, vector<1x16x1xf32> -> vector<1x16x18xf32>
    %17 = arith.addf %12, %16 : vector<1x16x18xf32>
    %18 = vector.extract_strided_slice %3 {offsets = [0, 32, 0], sizes = [1, 16, 16], strides = [1, 1, 1]} : vector<1x48x16xf32> to vector<1x16x16xf32>
    %cst_10 = arith.constant 0.000000e+00 : f32
    %19 = vector.broadcast %cst_10 : f32 to vector<1x16x2xf32>
    %20 = tpu.concatenate %18, %19 in 2 : vector<1x16x16xf32>, vector<1x16x2xf32> -> vector<1x16x18xf32>
    %21 = arith.addf %17, %20 : vector<1x16x18xf32>
    %cst_11 = arith.constant 0.000000e+00 : f32
    %22 = vector.broadcast %cst_11 : f32 to vector<1x16x18xf32>
    %23 = arith.maximumf %21, %22 : vector<1x16x18xf32>
    %c48 = arith.constant 48 : index
    %c0_12 = arith.constant 0 : index
    %24 = vector.load %arg2[%c48, %c0_12] : memref<144x16xf32, #tpu.memory_space<vmem>>, vector<48x16xf32>
    %25 = vector.shape_cast %24 : vector<48x16xf32> to vector<1x48x16xf32>
    %cst_13 = arith.constant dense<0.000000e+00> : vector<1x48x18xf32>
    %26 = tpu.matmul %25, %23, %cst_13 {dimension_numbers = #tpu.dot_dimension_numbers<[2], [1], [1], [2], [0, 0, 0, 1, 1, 2], [0], [0]>} : vector<1x48x16xf32>, vector<1x16x18xf32>, vector<1x48x18xf32> -> vector<1x48x18xf32>
    %c1 = arith.constant 1 : index
    %c0_14 = arith.constant 0 : index
    %c0_15 = arith.constant 0 : index
    %27 = vector.load %arg3[%c1, %c0_14, %c0_15] : memref<3x16x1xf32, #tpu.memory_space<vmem>>, vector<1x16x1xf32>
    %28 = vector.shape_cast %27 : vector<1x16x1xf32> to vector<16x1xf32>
    %29 = vector.shape_cast %28 : vector<16x1xf32> to vector<1x16x1xf32>
    %30 = vector.shape_cast %29 : vector<1x16x1xf32> to vector<1x16x1xf32>
    %31 = vector.broadcast %30 : vector<1x16x1xf32> to vector<1x16x22xf32>
    %32 = vector.extract_strided_slice %26 {offsets = [0, 0, 0], sizes = [1, 16, 18], strides = [1, 1, 1]} : vector<1x48x18xf32> to vector<1x16x18xf32>
    %cst_16 = arith.constant 0.000000e+00 : f32
    %33 = vector.broadcast %cst_16 : f32 to vector<1x16x4xf32>
    %34 = tpu.concatenate %33, %32 in 2 : vector<1x16x4xf32>, vector<1x16x18xf32> -> vector<1x16x22xf32>
    %35 = arith.addf %31, %34 : vector<1x16x22xf32>
    %36 = vector.extract_strided_slice %26 {offsets = [0, 16, 0], sizes = [1, 16, 18], strides = [1, 1, 1]} : vector<1x48x18xf32> to vector<1x16x18xf32>
    %cst_17 = arith.constant 0.000000e+00 : f32
    %37 = vector.broadcast %cst_17 : f32 to vector<1x16x2xf32>
    %cst_18 = arith.constant 0.000000e+00 : f32
    %38 = vector.broadcast %cst_18 : f32 to vector<1x16x2xf32>
    %39 = tpu.concatenate %37, %36, %38 in 2 : vector<1x16x2xf32>, vector<1x16x18xf32>, vector<1x16x2xf32> -> vector<1x16x22xf32>
    %40 = arith.addf %35, %39 : vector<1x16x22xf32>
    %41 = vector.extract_strided_slice %26 {offsets = [0, 32, 0], sizes = [1, 16, 18], strides = [1, 1, 1]} : vector<1x48x18xf32> to vector<1x16x18xf32>
    %cst_19 = arith.constant 0.000000e+00 : f32
    %42 = vector.broadcast %cst_19 : f32 to vector<1x16x4xf32>
    %43 = tpu.concatenate %41, %42 in 2 : vector<1x16x18xf32>, vector<1x16x4xf32> -> vector<1x16x22xf32>
    %44 = arith.addf %40, %43 : vector<1x16x22xf32>
    %cst_20 = arith.constant 0.000000e+00 : f32
    %45 = vector.broadcast %cst_20 : f32 to vector<1x16x22xf32>
    %46 = arith.maximumf %44, %45 : vector<1x16x22xf32>
    %c96 = arith.constant 96 : index
    %c0_21 = arith.constant 0 : index
    %47 = vector.load %arg2[%c96, %c0_21] : memref<144x16xf32, #tpu.memory_space<vmem>>, vector<48x16xf32>
    %48 = vector.shape_cast %47 : vector<48x16xf32> to vector<1x48x16xf32>
    %cst_22 = arith.constant dense<0.000000e+00> : vector<1x48x22xf32>
    %49 = tpu.matmul %48, %46, %cst_22 {dimension_numbers = #tpu.dot_dimension_numbers<[2], [1], [1], [2], [0, 0, 0, 1, 1, 2], [0], [0]>} : vector<1x48x16xf32>, vector<1x16x22xf32>, vector<1x48x22xf32> -> vector<1x48x22xf32>
    %c2 = arith.constant 2 : index
    %c0_23 = arith.constant 0 : index
    %c0_24 = arith.constant 0 : index
    %50 = vector.load %arg3[%c2, %c0_23, %c0_24] : memref<3x16x1xf32, #tpu.memory_space<vmem>>, vector<1x16x1xf32>
    %51 = vector.shape_cast %50 : vector<1x16x1xf32> to vector<16x1xf32>
    %52 = vector.shape_cast %51 : vector<16x1xf32> to vector<1x16x1xf32>
    %53 = vector.shape_cast %52 : vector<1x16x1xf32> to vector<1x16x1xf32>
    %54 = vector.broadcast %53 : vector<1x16x1xf32> to vector<1x16x30xf32>
    %55 = vector.extract_strided_slice %49 {offsets = [0, 0, 0], sizes = [1, 16, 22], strides = [1, 1, 1]} : vector<1x48x22xf32> to vector<1x16x22xf32>
    %cst_25 = arith.constant 0.000000e+00 : f32
    %56 = vector.broadcast %cst_25 : f32 to vector<1x16x8xf32>
    %57 = tpu.concatenate %56, %55 in 2 : vector<1x16x8xf32>, vector<1x16x22xf32> -> vector<1x16x30xf32>
    %58 = arith.addf %54, %57 : vector<1x16x30xf32>
    %59 = vector.extract_strided_slice %49 {offsets = [0, 16, 0], sizes = [1, 16, 22], strides = [1, 1, 1]} : vector<1x48x22xf32> to vector<1x16x22xf32>
    %cst_26 = arith.constant 0.000000e+00 : f32
    %60 = vector.broadcast %cst_26 : f32 to vector<1x16x4xf32>
    %cst_27 = arith.constant 0.000000e+00 : f32
    %61 = vector.broadcast %cst_27 : f32 to vector<1x16x4xf32>
    %62 = tpu.concatenate %60, %59, %61 in 2 : vector<1x16x4xf32>, vector<1x16x22xf32>, vector<1x16x4xf32> -> vector<1x16x30xf32>
    %63 = arith.addf %58, %62 : vector<1x16x30xf32>
    %64 = vector.extract_strided_slice %49 {offsets = [0, 32, 0], sizes = [1, 16, 22], strides = [1, 1, 1]} : vector<1x48x22xf32> to vector<1x16x22xf32>
    %cst_28 = arith.constant 0.000000e+00 : f32
    %65 = vector.broadcast %cst_28 : f32 to vector<1x16x8xf32>
    %66 = tpu.concatenate %64, %65 in 2 : vector<1x16x22xf32>, vector<1x16x8xf32> -> vector<1x16x30xf32>
    %67 = arith.addf %63, %66 : vector<1x16x30xf32>
    %cst_29 = arith.constant 0.000000e+00 : f32
    %68 = vector.broadcast %cst_29 : f32 to vector<1x16x30xf32>
    %69 = arith.maximumf %67, %68 : vector<1x16x30xf32>
    %c0_30 = arith.constant 0 : index
    %c0_31 = arith.constant 0 : index
    %c0_32 = arith.constant 0 : index
    %70 = vector.load %arg4[%c0_30, %c0_31, %c0_32] : memref<1x16x30xf32, #tpu.memory_space<vmem>>, vector<1x16x30xf32>
    tpu.vector_store %arg4[%c0_30, %c0_31, %c0_32], %69 {strides = array<i32>} : memref<1x16x30xf32, #tpu.memory_space<vmem>>, vector<1x16x30xf32>,
    return
  }
  func.func @transform_0(%arg0: i32) -> (i32, i32, i32) {
    %c0_i32 = arith.constant 0 : i32
    %c0_i32_0 = arith.constant 0 : i32
    %c0_i32_1 = arith.constant 0 : i32
    return %arg0, %c0_i32, %c0_i32_0 : i32, i32, i32
  }
  func.func @transform_1(%arg0: i32) -> (i32, i32) {
    %c0_i32 = arith.constant 0 : i32
    %c0_i32_0 = arith.constant 0 : i32
    %c0_i32_1 = arith.constant 0 : i32
    return %c0_i32, %c0_i32_0 : i32, i32
  }
  func.func @transform_2(%arg0: i32) -> (i32, i32, i32) {
    %c0_i32 = arith.constant 0 : i32
    %c0_i32_0 = arith.constant 0 : i32
    %c0_i32_1 = arith.constant 0 : i32
    %c0_i32_2 = arith.constant 0 : i32
    return %c0_i32, %c0_i32_0, %c0_i32_1 : i32, i32, i32
  }
  func.func @transform_3(%arg0: i32) -> (i32, i32, i32) {
    %c0_i32 = arith.constant 0 : i32
    %c0_i32_0 = arith.constant 0 : i32
    %c0_i32_1 = arith.constant 0 : i32
    return %arg0, %c0_i32, %c0_i32_0 : i32, i32, i32
  }
}

</mosaic_0001>

<llo_original>
// kernel: tpu_custom_call.1
$region0: #{tpu_custom_call.1}
  #allocation0 [shape = 'u32[]', space=smem, size = 0x4, offset = 0x4, fixed_abs, tag = 'smem constant byte address 0x4 - core index']
  #allocation1 [shape = 'u32[72,128]{1,0:T(1,128)}', space=vmem, size = 0x9000, scoped, tag = 'internal scratch']
  %s0 = inlined_call_operand.vmem [shape: f32[2,16,16], index: 0, kind: input, shape index: {}]
  %s1 = inlined_call_operand.vmem [shape: f32[144,16], index: 1, kind: input, shape index: {}]
  %s2 = inlined_call_operand.vmem [shape: f32[3,16,1], index: 2, kind: input, shape index: {}]
  %s3 = inlined_call_operand.hbm [shape: f32[2,16,30], index: 3, kind: output, shape index: {}]
  %s4 = sld [smem:[#allocation0]]
  $region45: #{tpu_custom_call.1} parent=0
    _
  %s6 = ssub.s32 1, %s4
  %s7 = scalar_select 0, %s6, %s4
  $region1: #{tpu_custom_call.1} parent=0
    #allocation2 [shape = 'u8[16384]{0}', space=vmem, size = 0x4000, scoped, tag = 'output window, operand 0']
    #allocation3 [shape = 's32[2]{0}', space=sflag, size = 0x8, scoped, tag = 'scoped memory for tpu_custom_call.1']
    %8 = vsyncpa [#allocation3], 0
    %s9 = scalar_lea.sflag [#allocation3], 1
    %10 = vsyncpa %s9, 0
    loop: start=0, step=1, limit=4
    $region2: #{tpu_custom_call.1} parent=1 // loop_pre_header
      _
    $region3: #{tpu_custom_call.1} parent=1 // loop_header
      %s12 = sphi 0, %s16
      %p13 = scmp.ge.s32.totalorder %s12, 4
      %s22 = sphi 0, %s24
      %s25 = sphi 0, %s22
      %s26 = sphi 0, %s25
      %s42 = sphi 0, %s26
      %s46 = sphi 0, %s46
      %s48 = sphi 0, %s46
      %s49 = sphi 0, %s48
      %s63 = sphi 0, %s49
      %s67 = sphi 0, %s67
      %s69 = sphi 0, %s67
      %s70 = sphi 0, %s69
      %s84 = sphi 0, %s70
      %s90 = sphi 0, %s92
      %s93 = sphi 0, %s90
      %s94 = sphi 0, %s93
      %s110 = sphi 0, %s94
    $region4: #{tpu_custom_call.1} parent=1 // loop_header_branch
      %15 = sbr.rel (%p13) target = $region8
    $region5: #{tpu_custom_call.1} parent=1 // loop_body
      %s17 = ssub.s32 %s12, 1
      %s18 = ssub.s32 %s12, 2
      %s19 = sadd.s32 %s12, 1
      %s20 = ssub.s32 %s12, %s19
      %p21 = scmp.eq.s32.totalorder %s20, 0
      %s23 = sadd.s32 %s22, 1
      %s24 = scalar_select %p21, %s22, %s23
      %p27 = pneg %p21
      %p28 = scmp.eq.s32.totalorder %s12, 1
      %p29 = por %p27, %p28
      %p30 = scmp.ne.s32.totalorder %s22, %s25
      %p31 = scmp.eq.s32.totalorder %s12, 0
      %p32 = por %p30, %p31
      %p33 = scmp.ne.s32.totalorder %s22, %s25
      %p34 = scmp.eq.s32.totalorder %s17, 1
      %p35 = por %p33, %p34
      %p36 = scmp.ne.s32.totalorder %s25, %s26
      %p37 = scmp.eq.s32.totalorder %s17, 0
      %p38 = por %p36, %p37
      %p39 = scmp.ne.s32.totalorder %s25, %s26
      %p40 = scmp.eq.s32.totalorder %s18, 1
      %p41 = por %p39, %p40
      %p43 = scmp.ne.s32.totalorder %s26, %s42
      %p44 = scmp.eq.s32.totalorder %s18, 0
      %p45 = por %p43, %p44
      %s47 = sadd.s32 %s46, 1
      %p50 = scmp.eq.s32.totalorder %s12, 1
      %p51 = scmp.ne.s32.totalorder %s46, %s48
      %p52 = scmp.eq.s32.totalorder %s12, 0
      %p53 = por %p51, %p52
      %p54 = scmp.ne.s32.totalorder %s46, %s48
      %p55 = scmp.eq.s32.totalorder %s17, 1
      %p56 = por %p54, %p55
      %p57 = scmp.ne.s32.totalorder %s48, %s49
      %p58 = scmp.eq.s32.totalorder %s17, 0
      %p59 = por %p57, %p58
      %p60 = scmp.ne.s32.totalorder %s48, %s49
      %p61 = scmp.eq.s32.totalorder %s18, 1
      %p62 = por %p60, %p61
      %p64 = scmp.ne.s32.totalorder %s49, %s63
      %p65 = scmp.eq.s32.totalorder %s18, 0
      %p66 = por %p64, %p65
      %s68 = sadd.s32 %s67, 1
      %p71 = scmp.eq.s32.totalorder %s12, 1
      %p72 = scmp.ne.s32.totalorder %s67, %s69
      %p73 = scmp.eq.s32.totalorder %s12, 0
      %p74 = por %p72, %p73
      %p75 = scmp.ne.s32.totalorder %s67, %s69
      %p76 = scmp.eq.s32.totalorder %s17, 1
      %p77 = por %p75, %p76
      %p78 = scmp.ne.s32.totalorder %s69, %s70
      %p79 = scmp.eq.s32.totalorder %s17, 0
      %p80 = por %p78, %p79
      %p81 = scmp.ne.s32.totalorder %s69, %s70
      %p82 = scmp.eq.s32.totalorder %s18, 1
      %p83 = por %p81, %p82
      %p85 = scmp.ne.s32.totalorder %s70, %s84
      %p86 = scmp.eq.s32.totalorder %s18, 0
      %p87 = por %p85, %p86
      %s88 = ssub.s32 %s12, %s19
      %p89 = scmp.eq.s32.totalorder %s88, 0
      %s91 = sadd.s32 %s90, 1
      %s92 = scalar_select %p89, %s90, %s91
      %p95 = pneg %p89
      %p96 = scmp.eq.s32.totalorder %s12, 1
      %p97 = por %p95, %p96
      %p98 = scmp.ne.s32.totalorder %s90, %s93
      %p99 = scmp.eq.s32.totalorder %s12, 0
      %p100 = por %p98, %p99
      %p101 = scmp.ne.s32.totalorder %s90, %s93
      %p102 = scmp.eq.s32.totalorder %s17, 1
      %p103 = por %p101, %p102
      %p104 = scmp.ne.s32.totalorder %s93, %s94
      %p105 = scmp.eq.s32.totalorder %s17, 0
      %p106 = por %p104, %p105
      %p107 = scmp.ne.s32.totalorder %s93, %s94
      %p108 = scmp.eq.s32.totalorder %s18, 1
      %p109 = por %p107, %p108
      %p111 = scmp.ne.s32.totalorder %s94, %s110
      %p112 = scmp.eq.s32.totalorder %s18, 0
      %p113 = por %p111, %p112
      %p114 = scmp.le.s32.totalorder 1, %s12
      %p115 = scmp.lt.s32.totalorder %s12, 3
      %p116 = pnand %p114, %p115
      %p117 = pneg %p116
      // Predicated region
      $region9: #{tpu_custom_call.1} parent=5 // pred_check
        _
      $region10: #{tpu_custom_call.1} parent=5 // pred_check_branch
        %119 = sbr.rel (%p116) target = $region12
      $region11: #{tpu_custom_call.1} parent=5 // pred_region
        %s120 = ssub.s32 %s12, 1
        // Predicated region
        $region13: #{tpu_custom_call.1} parent=11 // pred_check
          %p121 = pneg %p59
        $region14: #{tpu_custom_call.1} parent=11 // pred_check_branch
          %123 = sbr.rel (%p121) target = $region16
        $region15: #{tpu_custom_call.1} parent=11 // pred_region
          _
        $region16: #{tpu_custom_call.1} parent=11 // pred_fallthru
          _
        // Predicated region
        $region17: #{tpu_custom_call.1} parent=11 // pred_check
          %p124 = pneg %p80
        $region18: #{tpu_custom_call.1} parent=11 // pred_check_branch
          %126 = sbr.rel (%p124) target = $region20
        $region19: #{tpu_custom_call.1} parent=11 // pred_region
          _
        $region20: #{tpu_custom_call.1} parent=11 // pred_fallthru
          _
      $region12: #{tpu_custom_call.1} parent=5 // pred_fallthru
        _
      %p127 = scmp.lt.s32.totalorder %s12, 2
      // Predicated region
      $region21: #{tpu_custom_call.1} parent=5 // pred_check
        %p128 = pneg %p127
      $region22: #{tpu_custom_call.1} parent=5 // pred_check_branch
        %130 = sbr.rel (%p128) target = $region24
      $region23: #{tpu_custom_call.1} parent=5 // pred_region
        // Predicated region
        $region25: #{tpu_custom_call.1} parent=23 // pred_check
          %p131 = pneg %p32
        $region26: #{tpu_custom_call.1} parent=23 // pred_check_branch
          %133 = sbr.rel (%p131) target = $region28
        $region27: #{tpu_custom_call.1} parent=23 // pred_region
          %p134 = scmp.lt.s32.totalorder %s12, 1
          %s135 = scalar_select %p134, %s12, 1
          %s136 = smul.addr %s135, 2
          %s137 = smul.addr %s136, 8
          %s138 = scalar_lea.vmem %s0, %s137
        $region28: #{tpu_custom_call.1} parent=23 // pred_fallthru
          _
      $region24: #{tpu_custom_call.1} parent=5 // pred_fallthru
        _
      %p139 = scmp.le.s32.totalorder 1, %s12
      %p140 = scmp.lt.s32.totalorder %s12, 3
      %p141 = pnand %p139, %p140
      %p142 = pneg %p141
      // Predicated region
      $region29: #{tpu_custom_call.1} parent=5 // pred_check
        _
      $region30: #{tpu_custom_call.1} parent=5 // pred_check_branch
        %144 = sbr.rel (%p141) target = $region32
      $region31: #{tpu_custom_call.1} parent=5 // pred_region
        %s145 = ssub.s32 %s12, 1
        %p146 = scmp.lt.s32.totalorder %s17, 1
        %s147 = scalar_select %p146, %s17, 1
        %s148 = smul.addr %s147, 2
        %s149 = smul.addr %s148, 8
        %s150 = scalar_lea.vmem %s0, %s149
        %p151 = pneg %p38
        %p152 = pneg %p35
        %p153 = pneg %p59
        %p154 = pneg %p56
        %p155 = pneg %p80
        %p156 = pneg %p77
        %p157 = pneg %p106
        %p158 = pneg %p103
        %s159 = sand.u32 %s93, 1
        %s160 = scalar_lea.sflag [#allocation3], %s159
        %s161 = sand.u32 %s93, 1
        %s162 = smul.addr %s161, 16
        %s163 = scalar_lea.vmem [#allocation2], %s162
        %p164 = scmp.lt.s32.totalorder %s17, 1
        %s165 = scalar_select %p164, %s17, 1
        %s166 = smul.addr %s165, 2
        %s167 = smul.addr %s166, 8
        %s168 = scalar_lea.vmem %s0, %s167
        %v169 = vld [vmem:[%s168] sm:$0xff]
        %v170 = vld [vmem:[%s168 + $0x8] sm:$0xff]
        %v171 = vld [vmem:[%s1] sm:$0xff]
        %v172 = vld [vmem:[%s1 + $0x8] sm:$0xff]
        %v173 = vld [vmem:[%s1 + $0x10] sm:$0xff]
        %v174 = vld [vmem:[%s1 + $0x18] sm:$0xff]
        %v175 = vld [vmem:[%s1 + $0x20] sm:$0xff]
        %v176 = vld [vmem:[%s1 + $0x28] sm:$0xff]
        %vm177 = vcmask 130048
        %v179 = vsel %vm177, %v171, 0
        %v182 = vsel %vm177, %v172, 0
        %v185 = vsel %vm177, %v173, 0
        %v188 = vsel %vm177, %v174, 0
        %v191 = vsel %vm177, %v175, 0
        %v194 = vsel %vm177, %v176, 0
        %196 = vmatpush.msra.mxu0 0.0
        %197 = vmatpush.msra.mxu0 0.0
        %198 = vmatpush.msra.mxu0 0.0
        %199 = vmatpush.msra.mxu0 0.0
        %200 = vmatpush.msra.mxu0 0.0
        %201 = vmatpush.msra.mxu0 0.0
        %202 = vmatpush.msra.mxu0 0.0
        %203 = vmatpush.msra.mxu0 0.0
        %204 = vmatpush.msra.mxu0 0.0
        %205 = vmatpush.msra.mxu0 0.0
        %206 = vmatpush.msra.mxu0 0.0
        %207 = vmatpush.msra.mxu0 0.0
        %208 = vmatpush.msra.mxu0 0.0
        %209 = vmatpush.msra.mxu0 0.0
        %210 = vmatpush.msra.mxu0 %v170
        %211 = vmatpush.msra.mxu0 %v169
        %212 = vmatmul.f32.gmra.mxu0 %v179
        %v213 = vpop.f32.mrf.mxu0
        %v214 = vadd.f32 0.0, %v213
        %215 = vmatmul.f32.gmra.mxu0 %v182
        %v216 = vpop.f32.mrf.mxu0
        %v217 = vadd.f32 0.0, %v216
        %218 = vmatmul.f32.gmra.mxu0 %v185
        %v219 = vpop.f32.mrf.mxu0
        %v220 = vadd.f32 0.0, %v219
        %221 = vmatmul.f32.gmra.mxu0 %v188
        %v222 = vpop.f32.mrf.mxu0
        %v223 = vadd.f32 0.0, %v222
        %224 = vmatmul.f32.gmra.mxu0 %v191
        %v225 = vpop.f32.mrf.mxu0
        %v226 = vadd.f32 0.0, %v225
        %227 = vmatmul.f32.gmra.mxu0 %v194
        %v228 = vpop.f32.mrf.mxu0
        %v229 = vadd.f32 0.0, %v228
        %230 = vdwg.mxu0
        %v231 = vld [vmem:[%s2] sm:$0xff]
        %v232 = vld [vmem:[%s2 + $0x8] sm:$0xff]
        %234 = vset.pattern.permute.xlu0 0
        %235 = vperm.xlu0 %234, %v231
        %v236 = vpop.permute.xlu0 %235
        %239 = vset.pattern.permute.xlu0 0
        %240 = vperm.xlu0 %239, %v232
        %v241 = vpop.permute.xlu0 %240
        %245 = vrot.lane.b32.xlu0 %v214, 2
        %v246 = vpop.permute.xlu0 %245
        %247 = vrot.lane.b32.xlu0 %v217, 2
        %v248 = vpop.permute.xlu0 %247
        %vm251 = vcmask 15360
        %v252 = vsel %vm251, 0.0, %v246
        %v253 = vsel %vm251, 0.0, %v248
        %v254 = vadd.f32 %v236, %v252
        %v255 = vadd.f32 %v241, %v253
        %258 = vrot.lane.b32.xlu0 %v220, 1
        %v259 = vpop.permute.xlu0 %258
        %260 = vrot.lane.b32.xlu0 %v223, 1
        %v261 = vpop.permute.xlu0 %260
        %vm264 = vcmask 7168
        %v265 = vsel %vm264, 0.0, %v259
        %v266 = vsel %vm264, 0.0, %v261
        %vm267 = vcmask 138240
        %v268 = vsel %vm267, %v265, 0.0
        %v269 = vsel %vm267, %v266, 0.0
        %v270 = vadd.f32 %v254, %v268
        %v271 = vadd.f32 %v255, %v269
        %v272 = vsel %vm177, %v226, 0.0
        %v273 = vsel %vm177, %v229, 0.0
        %v274 = vadd.f32 %v270, %v272
        %v275 = vadd.f32 %v271, %v273
        %v276 = vmax.f32 %v274, 0.0
        %v277 = vmax.f32 %v275, 0.0
        %v278 = vld [vmem:[%s1 + $0x30] sm:$0xff]
        %v279 = vld [vmem:[%s1 + $0x38] sm:$0xff]
        %v280 = vld [vmem:[%s1 + $0x40] sm:$0xff]
        %v281 = vld [vmem:[%s1 + $0x48] sm:$0xff]
        %v282 = vld [vmem:[%s1 + $0x50] sm:$0xff]
        %v283 = vld [vmem:[%s1 + $0x58] sm:$0xff]
        %v285 = vsel %vm177, %v278, 0
        %v288 = vsel %vm177, %v279, 0
        %v291 = vsel %vm177, %v280, 0
        %v294 = vsel %vm177, %v281, 0
        %v297 = vsel %vm177, %v282, 0
        %v300 = vsel %vm177, %v283, 0
        %302 = vmatpush.msra.mxu0 0.0
        %303 = vmatpush.msra.mxu0 0.0
        %304 = vmatpush.msra.mxu0 0.0
        %305 = vmatpush.msra.mxu0 0.0
        %306 = vmatpush.msra.mxu0 0.0
        %307 = vmatpush.msra.mxu0 0.0
        %308 = vmatpush.msra.mxu0 0.0
        %309 = vmatpush.msra.mxu0 0.0
        %310 = vmatpush.msra.mxu0 0.0
        %311 = vmatpush.msra.mxu0 0.0
        %312 = vmatpush.msra.mxu0 0.0
        %313 = vmatpush.msra.mxu0 0.0
        %314 = vmatpush.msra.mxu0 0.0
        %315 = vmatpush.msra.mxu0 0.0
        %316 = vmatpush.msra.mxu0 %v277
        %317 = vmatpush.msra.mxu0 %v276
        %318 = vmatmul.f32.gmra.mxu0 %v285
        %v319 = vpop.f32.mrf.mxu0
        %v320 = vadd.f32 0.0, %v319
        %321 = vmatmul.f32.gmra.mxu0 %v288
        %v322 = vpop.f32.mrf.mxu0
        %v323 = vadd.f32 0.0, %v322
        %324 = vmatmul.f32.gmra.mxu0 %v291
        %v325 = vpop.f32.mrf.mxu0
        %v326 = vadd.f32 0.0, %v325
        %327 = vmatmul.f32.gmra.mxu0 %v294
        %v328 = vpop.f32.mrf.mxu0
        %v329 = vadd.f32 0.0, %v328
        %330 = vmatmul.f32.gmra.mxu0 %v297
        %v331 = vpop.f32.mrf.mxu0
        %v332 = vadd.f32 0.0, %v331
        %333 = vmatmul.f32.gmra.mxu0 %v300
        %v334 = vpop.f32.mrf.mxu0
        %v335 = vadd.f32 0.0, %v334
        %336 = vdwg.mxu0
        %s337 = scalar_lea.vmem %s2, 16
        %v338 = vld [vmem:[%s337] sm:$0xff]
        %v339 = vld [vmem:[%s337 + $0x8] sm:$0xff]
        %341 = vset.pattern.permute.xlu0 0
        %342 = vperm.xlu0 %341, %v338
        %v343 = vpop.permute.xlu0 %342
        %346 = vset.pattern.permute.xlu0 0
        %347 = vperm.xlu0 %346, %v339
        %v348 = vpop.permute.xlu0 %347
        %352 = vrot.lane.b32.xlu0 %v320, 4
        %v353 = vpop.permute.xlu0 %352
        %354 = vrot.lane.b32.xlu0 %v323, 4
        %v355 = vpop.permute.xlu0 %354
        %vm358 = vcmask 31744
        %v359 = vsel %vm358, 0.0, %v353
        %v360 = vsel %vm358, 0.0, %v355
        %v361 = vadd.f32 %v343, %v359
        %v362 = vadd.f32 %v348, %v360
        %365 = vrot.lane.b32.xlu0 %v326, 2
        %v366 = vpop.permute.xlu0 %365
        %367 = vrot.lane.b32.xlu0 %v329, 2
        %v368 = vpop.permute.xlu0 %367
        %v371 = vsel %vm251, 0.0, %v366
        %v372 = vsel %vm251, 0.0, %v368
        %vm373 = vcmask 162816
        %v374 = vsel %vm373, %v371, 0.0
        %v375 = vsel %vm373, %v372, 0.0
        %v376 = vadd.f32 %v361, %v374
        %v377 = vadd.f32 %v362, %v375
        %vm378 = vcmask 146432
        %v379 = vsel %vm378, %v332, 0.0
        %v380 = vsel %vm378, %v335, 0.0
        %v381 = vadd.f32 %v376, %v379
        %v382 = vadd.f32 %v377, %v380
        %v383 = vmax.f32 %v381, 0.0
        %v384 = vmax.f32 %v382, 0.0
        %v385 = vld [vmem:[%s1 + $0x60] sm:$0xff]
        %v386 = vld [vmem:[%s1 + $0x68] sm:$0xff]
        %v387 = vld [vmem:[%s1 + $0x70] sm:$0xff]
        %v388 = vld [vmem:[%s1 + $0x78] sm:$0xff]
        %v389 = vld [vmem:[%s1 + $0x80] sm:$0xff]
        %v390 = vld [vmem:[%s1 + $0x88] sm:$0xff]
        %v392 = vsel %vm177, %v385, 0
        %v395 = vsel %vm177, %v386, 0
        %v398 = vsel %vm177, %v387, 0
        %v401 = vsel %vm177, %v388, 0
        %v404 = vsel %vm177, %v389, 0
        %v407 = vsel %vm177, %v390, 0
        %409 = vmatpush.msra.mxu0 0.0
        %410 = vmatpush.msra.mxu0 0.0
        %411 = vmatpush.msra.mxu0 0.0
        %412 = vmatpush.msra.mxu0 0.0
        %413 = vmatpush.msra.mxu0 0.0
        %414 = vmatpush.msra.mxu0 0.0
        %415 = vmatpush.msra.mxu0 0.0
        %416 = vmatpush.msra.mxu0 0.0
        %417 = vmatpush.msra.mxu0 0.0
        %418 = vmatpush.msra.mxu0 0.0
        %419 = vmatpush.msra.mxu0 0.0
        %420 = vmatpush.msra.mxu0 0.0
        %421 = vmatpush.msra.mxu0 0.0
        %422 = vmatpush.msra.mxu0 0.0
        %423 = vmatpush.msra.mxu0 %v384
        %424 = vmatpush.msra.mxu0 %v383
        %425 = vmatmul.f32.gmra.mxu0 %v392
        %v426 = vpop.f32.mrf.mxu0
        %v427 = vadd.f32 0.0, %v426
        %428 = vmatmul.f32.gmra.mxu0 %v395
        %v429 = vpop.f32.mrf.mxu0
        %v430 = vadd.f32 0.0, %v429
        %431 = vmatmul.f32.gmra.mxu0 %v398
        %v432 = vpop.f32.mrf.mxu0
        %v433 = vadd.f32 0.0, %v432
        %434 = vmatmul.f32.gmra.mxu0 %v401
        %v435 = vpop.f32.mrf.mxu0
        %v436 = vadd.f32 0.0, %v435
        %437 = vmatmul.f32.gmra.mxu0 %v404
        %v438 = vpop.f32.mrf.mxu0
        %v439 = vadd.f32 0.0, %v438
        %440 = vmatmul.f32.gmra.mxu0 %v407
        %v441 = vpop.f32.mrf.mxu0
        %v442 = vadd.f32 0.0, %v441
        %443 = vdwg.mxu0
        %s444 = scalar_lea.vmem %s2, 32
        %v445 = vld [vmem:[%s444] sm:$0xff]
        %v446 = vld [vmem:[%s444 + $0x8] sm:$0xff]
        %448 = vset.pattern.permute.xlu0 0
        %449 = vperm.xlu0 %448, %v445
        %v450 = vpop.permute.xlu0 %449
        %453 = vset.pattern.permute.xlu0 0
        %454 = vperm.xlu0 %453, %v446
        %v455 = vpop.permute.xlu0 %454
        %459 = vrot.lane.b32.xlu0 %v427, 8
        %v460 = vpop.permute.xlu0 %459
        %461 = vrot.lane.b32.xlu0 %v430, 8
        %v462 = vpop.permute.xlu0 %461
        %vm465 = vcmask 64512
        %v466 = vsel %vm465, 0.0, %v460
        %v467 = vsel %vm465, 0.0, %v462
        %v468 = vadd.f32 %v450, %v466
        %v469 = vadd.f32 %v455, %v467
        %472 = vrot.lane.b32.xlu0 %v433, 4
        %v473 = vpop.permute.xlu0 %472
        %474 = vrot.lane.b32.xlu0 %v436, 4
        %v475 = vpop.permute.xlu0 %474
        %v478 = vsel %vm358, 0.0, %v473
        %v479 = vsel %vm358, 0.0, %v475
        %vm480 = vcmask 211968
        %v481 = vsel %vm480, %v478, 0.0
        %v482 = vsel %vm480, %v479, 0.0
        %v483 = vadd.f32 %v468, %v481
        %v484 = vadd.f32 %v469, %v482
        %vm485 = vcmask 179200
        %v486 = vsel %vm485, %v439, 0.0
        %v487 = vsel %vm485, %v442, 0.0
        %v488 = vadd.f32 %v483, %v486
        %v489 = vadd.f32 %v484, %v487
        %v490 = vmax.f32 %v488, 0.0
        %v491 = vmax.f32 %v489, 0.0
        %vm492 = vcmask 244736
        %493 = vst.msk [vmem:[%s163] sm:$0xff] %vm492, %v490
        %494 = vst.msk [vmem:[%s163 + $0x8] sm:$0xff] %vm492, %v491
        %s495 = sand.u32 %s93, 1
        %s496 = scalar_lea.sflag [#allocation3], %s495
        %s497 = sand.u32 %s93, 1
        %s498 = smul.addr %s497, 16
        %s499 = scalar_lea.vmem [#allocation2], %s498
        // Predicated region
        $region33: #{tpu_custom_call.1} parent=31 // pred_check
          %p500 = pneg %p103
        $region34: #{tpu_custom_call.1} parent=31 // pred_check_branch
          %502 = sbr.rel (%p500) target = $region36
        $region35: #{tpu_custom_call.1} parent=31 // pred_region
          %504 = vsyncadd %s496, 0
          %s505 = smul.addr %s17, 2
          %s506 = smul.addr %s505, 8
          %s507 = scalar_lea.hbm %s3, %s506
          %s508 = sshll.u32 %s499, 4
          %s509 = int_to_ptr.vmem [resolvable:$true] %s508
          %s510 = sshll.u32 %s507, 4
          %s511 = int_to_ptr.hbm [resolvable:$true] %s510
          %516 = dma.vmem_to_hbm [thread:$0]  %s509, 256, %s511, %s496, 128, 128, 8
        $region36: #{tpu_custom_call.1} parent=31 // pred_fallthru
          _
      $region32: #{tpu_custom_call.1} parent=5 // pred_fallthru
        _
      %p517 = scmp.le.s32.totalorder 2, %s12
      // Predicated region
      $region37: #{tpu_custom_call.1} parent=5 // pred_check
        %p518 = pneg %p517
      $region38: #{tpu_custom_call.1} parent=5 // pred_check_branch
        %520 = sbr.rel (%p518) target = $region40
      $region39: #{tpu_custom_call.1} parent=5 // pred_region
        %s521 = ssub.s32 %s12, 2
        // Predicated region
        $region41: #{tpu_custom_call.1} parent=39 // pred_check
          %p522 = pneg %p109
        $region42: #{tpu_custom_call.1} parent=39 // pred_check_branch
          %524 = sbr.rel (%p522) target = $region44
        $region43: #{tpu_custom_call.1} parent=39 // pred_region
          %s525 = sand.u32 %s94, 1
          %s526 = scalar_lea.sflag [#allocation3], %s525
          %s527 = sand.u32 %s94, 1
          %s528 = smul.addr %s527, 16
          %s529 = scalar_lea.vmem [#allocation2], %s528
          %531 = dma.done %s526, 256
        $region44: #{tpu_custom_call.1} parent=39 // pred_fallthru
          _
      $region40: #{tpu_custom_call.1} parent=5 // pred_fallthru
        _
    $region6: #{tpu_custom_call.1} parent=1 // loop_footer
      %s16 = sadd.s32 1, %s12
    $region7: #{tpu_custom_call.1} parent=1 // loop_footer_branch
      %11 = sbr.rel target = $region3
    $region8: #{tpu_custom_call.1} parent=1 // loop_exit
      _
    %532 = vsyncpa [#allocation3], 1
    %s533 = scalar_lea.sflag [#allocation3], 1
    %534 = vsyncpa %s533, 1

</llo_original>
